<compile_context>
chip_gen: v5e
topology: v5e:2x2
jax: 0.10.0
libtpu: 0.0.40
codegen_flags: <defaults>
</compile_context>

<pallas_src>
import jax
import jax.numpy as jnp
from jax.experimental import pallas as pl
from jax.experimental.pallas import tpu as pltpu

EPS = 1e-5


def bottleneck_kernel(x_ref, w1_ref, b1_ref, w2_ref, b2_ref, w3_ref, b3_ref,
                      mask_ref, o_ref):
    x = x_ref[...]                                        # (Cin, LT) f32

    # ---- conv1 (1x1) + folded BN + ReLU: channel matmul + bias -------------
    y1 = jnp.dot(w1_ref[...], x, preferred_element_type=jnp.float32)
    y1 = jnp.maximum(y1 + b1_ref[...], 0.0)               # (planes, LT)

    # ---- conv2 (k=3, stride=1, pad=1) + folded BN + ReLU -------------------
    # One fused matmul over the stacked [y[l-1]; y[l]; y[l+1]] operand.
    # Batch elements are folded into the lane axis, so columns at l==0 /
    # l==L-1 of each batch element are zeroed with a precomputed 0/1 mask
    # (this also removes the circular roll wrap-around).
    lt = y1.shape[1]
    y_prev = pltpu.roll(y1, shift=1, axis=1) * mask_ref[0:1, :]
    y_next = pltpu.roll(y1, shift=lt - 1, axis=1) * mask_ref[1:2, :]
    stacked = jnp.concatenate([y_prev, y1, y_next], axis=0)   # (3*planes, LT)
    y2 = jnp.dot(w2_ref[...], stacked, preferred_element_type=jnp.float32)
    y2 = jnp.maximum(y2 + b2_ref[...], 0.0)               # (planes, LT)

    # ---- conv3 (1x1, expansion=4) + folded BN ------------------------------
    y3 = jnp.dot(w3_ref[...], y2, preferred_element_type=jnp.float32)
    y3 = y3 + b3_ref[...]                                 # (Cout, LT)

    # ---- residual add + ReLU -----------------------------------------------
    o_ref[...] = jnp.maximum(y3 + x, 0.0).astype(o_ref.dtype)


def _fold_bn(bn):
    """bn: (4, C, 1) stack [gamma, beta, mean, var] -> (scale, shift), each (C, 1)."""
    gamma, beta, mean, var = bn[0], bn[1], bn[2], bn[3]
    scale = gamma / jnp.sqrt(var + EPS)
    shift = beta - mean * scale
    return scale, shift


def _pick_b_tile(n, length, max_lanes=2048):
    """Largest batch tile whose lane width (b_tile*L) is a multiple of 128,
    preferring to keep >=2 grid steps (v7x has 2 TensorCores)."""
    divs = [d for d in range(1, n + 1) if n % d == 0]
    lane_ok = [d for d in divs if (d * length) % 128 == 0 and d * length <= max_lanes]
    pref = [d for d in lane_ok if n // d >= 2]
    if pref:
        return max(pref)
    if lane_ok:
        return max(lane_ok)
    return n   # fall back: lane block == full array dim (BlockSpec-legal)


def bottleneck_forward(x, w1, w2, w3, bn1, bn2, bn3, *, b_tile=None):
    """x: (N, Cin, L); w1: (planes, Cin); w2: (planes, planes, 3) [torch layout];
       w3: (Cout, planes); bn*: (4, C, 1) stacks of [gamma, beta, mean, var]."""
    N, Cin, L = x.shape
    planes = w1.shape[0]
    Cout = w3.shape[0]
    assert Cout == Cin, "downsample=None requires inplanes == planes * expansion"

    # ---- host-side: fold eval-mode BN into conv weights / biases -----------
    s1, sh1 = _fold_bn(bn1)
    s2, sh2 = _fold_bn(bn2)
    s3, sh3 = _fold_bn(bn3)
    w1f = (w1 * s1).astype(jnp.float32)                              # (planes, Cin)
    # (out, in, k): scale per out channel -> (out, k, in) -> (out, 3*in)
    w2f = (w2 * s2[:, :, None]).transpose(0, 2, 1).reshape(planes, 3 * planes)
    w2f = w2f.astype(jnp.float32)
    w3f = (w3 * s3).astype(jnp.float32)                              # (Cout, planes)

    # ---- host-side layout plumbing: fold batch into the lane axis ----------
    if b_tile is None:
        b_tile = _pick_b_tile(N, L)
    assert N % b_tile == 0
    LT = b_tile * L
    x2 = jnp.transpose(x, (1, 0, 2)).reshape(Cin, N * L)             # (Cin, N*L)

    # 0/1 masks zeroing l==0 (for y[l-1]) / l==L-1 (for y[l+1]) columns.
    pos = jnp.arange(LT) % L
    masks = jnp.stack([(pos != 0), (pos != L - 1)], axis=0).astype(jnp.float32)

    out2 = pl.pallas_call(
        bottleneck_kernel,
        out_shape=jax.ShapeDtypeStruct((Cout, N * L), x.dtype),
        grid=(N // b_tile,),
        in_specs=[
            pl.BlockSpec((Cin, LT), lambda i: (0, i)),
            pl.BlockSpec((planes, Cin), lambda i: (0, 0)),
            pl.BlockSpec((planes, 1), lambda i: (0, 0)),
            pl.BlockSpec((planes, 3 * planes), lambda i: (0, 0)),
            pl.BlockSpec((planes, 1), lambda i: (0, 0)),
            pl.BlockSpec((Cout, planes), lambda i: (0, 0)),
            pl.BlockSpec((Cout, 1), lambda i: (0, 0)),
            pl.BlockSpec((2, LT), lambda i: (0, 0)),
        ],
        out_specs=pl.BlockSpec((Cout, LT), lambda i: (0, i)),
        compiler_params=pltpu.CompilerParams(
            dimension_semantics=("parallel",),
            vmem_limit_bytes=32 * 1024 * 1024,
        ),
    )(x2, w1f, sh1, w2f, sh2, w3f, sh3, masks)

    # un-fold the batch axis: (Cout, N*L) -> (N, Cout, L)
    return jnp.transpose(out2.reshape(Cout, N, L), (1, 0, 2))


def reference_forward(x, w1, w2, w3, bn1, bn2, bn3):
    """Pure-JAX reference of the same forward pass (eval-mode BN, un-folded)."""
    def bn(y, p):
        g, b, m, v = p[0][None], p[1][None], p[2][None], p[3][None]  # (1, C, 1)
        return (y - m) / jnp.sqrt(v + EPS) * g + b

    L = x.shape[-1]
    y = jnp.einsum('oc,ncl->nol', w1, x)
    y = jax.nn.relu(bn(y, bn1))
    yp = jnp.pad(y, ((0, 0), (0, 0), (1, 1)))
    y2 = sum(jnp.einsum('oc,ncl->nol', w2[:, :, k], yp[:, :, k:k + L])
             for k in range(3))
    y2 = jax.nn.relu(bn(y2, bn2))
    y3 = jnp.einsum('oc,ncl->nol', w3, y2)
    y3 = bn(y3, bn3)
    return jax.nn.relu(y3 + x)


if __name__ == "__main__":
    # Small config: inplanes=16, planes=4 (expansion 4 => Cout=16), L=32, N=8.
    # Default batch tile b_tile=4 -> each grid step works on a lane-dense
    # (16, 128) slab, with a 2-step "parallel" grid.
    N, inplanes, planes, L = 8, 16, 4, 32
    Cout = planes * 4

    key = jax.random.PRNGKey(0)
    ks = jax.random.split(key, 10)

    x = jax.random.normal(ks[0], (N, inplanes, L), jnp.float32)

    # Conv weights, Kaiming-ish scale (bias=False in the module).
    w1 = jax.random.normal(ks[1], (planes, inplanes), jnp.float32) * (1.0 / inplanes) ** 0.5
    w2 = jax.random.normal(ks[2], (planes, planes, 3), jnp.float32) * (1.0 / (3 * planes)) ** 0.5
    w3 = jax.random.normal(ks[3], (Cout, planes), jnp.float32) * (1.0 / planes) ** 0.5

    def make_bn(c, kg, kb, km, kv):
        gamma = 1.0 + 0.1 * jax.random.normal(kg, (c, 1), jnp.float32)
        beta = 0.1 * jax.random.normal(kb, (c, 1), jnp.float32)
        mean = 0.1 * jax.random.normal(km, (c, 1), jnp.float32)
        var = 0.5 + jax.random.uniform(kv, (c, 1), jnp.float32)
        return jnp.stack([gamma, beta, mean, var], axis=0)  # (4, c, 1)

    bkeys = jax.random.split(ks[4], 12)
    bn1 = make_bn(planes, *bkeys[0:4])
    bn2 = make_bn(planes, *bkeys[4:8])
    bn3 = make_bn(Cout, *bkeys[8:12])

    ref = reference_forward(x, w1, w2, w3, bn1, bn2, bn3)

    out = bottleneck_forward(x, w1, w2, w3, bn1, bn2, bn3)
    out = jax.block_until_ready(out)

    assert out.shape == (N, Cout, L)
    err = jnp.max(jnp.abs(out - ref))
    assert jnp.allclose(out, ref, atol=1e-4, rtol=1e-4), f"max abs err {err}"

    print("KERNEL_OK")
</pallas_src>

<mosaic_0001>
module attributes {stable_mosaic.version = 11 : i64} {
  func.func @bottleneck_kernel(%arg0: i32, %arg1: memref<16x128xf32, #tpu.memory_space<vmem>>, %arg2: memref<4x16xf32, #tpu.memory_space<vmem>>, %arg3: memref<4x1xf32, #tpu.memory_space<vmem>>, %arg4: memref<4x12xf32, #tpu.memory_space<vmem>>, %arg5: memref<4x1xf32, #tpu.memory_space<vmem>>, %arg6: memref<16x4xf32, #tpu.memory_space<vmem>>, %arg7: memref<16x1xf32, #tpu.memory_space<vmem>>, %arg8: memref<2x128xf32, #tpu.memory_space<vmem>>, %arg9: memref<16x128xf32, #tpu.memory_space<vmem>>) attributes {dimension_semantics = [#tpu.dimension_semantics<parallel>], iteration_bounds = array<i64: 2>, scalar_prefetch = 0 : i64, scratch_operands = 0 : i64, tpu.core_type = #tpu.core_type<tc>, window_params = [{transform_indices = @transform_0, window_bounds = array<i64: 16, 128>}, {pipeline_mode = #tpu.pipeline_mode<synchronous>, transform_indices = @transform_1, window_bounds = array<i64: 4, 16>}, {pipeline_mode = #tpu.pipeline_mode<synchronous>, transform_indices = @transform_2, window_bounds = array<i64: 4, 1>}, {pipeline_mode = #tpu.pipeline_mode<synchronous>, transform_indices = @transform_3, window_bounds = array<i64: 4, 12>}, {pipeline_mode = #tpu.pipeline_mode<synchronous>, transform_indices = @transform_4, window_bounds = array<i64: 4, 1>}, {pipeline_mode = #tpu.pipeline_mode<synchronous>, transform_indices = @transform_5, window_bounds = array<i64: 16, 4>}, {pipeline_mode = #tpu.pipeline_mode<synchronous>, transform_indices = @transform_6, window_bounds = array<i64: 16, 1>}, {pipeline_mode = #tpu.pipeline_mode<synchronous>, transform_indices = @transform_7, window_bounds = array<i64: 2, 128>}, {transform_indices = @transform_8, window_bounds = array<i64: 16, 128>}]} {
    %c0 = arith.constant 0 : index
    %c0_0 = arith.constant 0 : index
    %0 = vector.load %arg1[%c0, %c0_0] : memref<16x128xf32, #tpu.memory_space<vmem>>, vector<16x128xf32>
    %c0_1 = arith.constant 0 : index
    %c0_2 = arith.constant 0 : index
    %1 = vector.load %arg2[%c0_1, %c0_2] : memref<4x16xf32, #tpu.memory_space<vmem>>, vector<4x16xf32>
    %cst = arith.constant dense<0.000000e+00> : vector<4x128xf32>
    %2 = tpu.matmul %1, %0, %cst {dimension_numbers = #tpu.dot_dimension_numbers<[1], [0], [0], [1], [0, 0, 1, 1], [], []>} : vector<4x16xf32>, vector<16x128xf32>, vector<4x128xf32> -> vector<4x128xf32>
    %c0_3 = arith.constant 0 : index
    %c0_4 = arith.constant 0 : index
    %3 = vector.load %arg3[%c0_3, %c0_4] : memref<4x1xf32, #tpu.memory_space<vmem>>, vector<4x1xf32>
    %4 = vector.broadcast %3 : vector<4x1xf32> to vector<4x128xf32>
    %5 = arith.addf %2, %4 : vector<4x128xf32>
    %cst_5 = arith.constant 0.000000e+00 : f32
    %6 = vector.broadcast %cst_5 : f32 to vector<4x128xf32>
    %7 = arith.maximumf %5, %6 : vector<4x128xf32>
    %c1_i32 = arith.constant 1 : i32
    %8 = tpu.dynamic_rotate %7 by %c1_i32 dim 1 : vector<4x128xf32>, i32 -> vector<4x128xf32>
    %c0_6 = arith.constant 0 : index
    %c0_7 = arith.constant 0 : index
    %9 = vector.load %arg8[%c0_6, %c0_7] : memref<2x128xf32, #tpu.memory_space<vmem>>, vector<1x128xf32>
    %10 = vector.broadcast %9 : vector<1x128xf32> to vector<4x128xf32>
    %11 = arith.mulf %8, %10 : vector<4x128xf32>
    %c127_i32 = arith.constant 127 : i32
    %12 = tpu.dynamic_rotate %7 by %c127_i32 dim 1 : vector<4x128xf32>, i32 -> vector<4x128xf32>
    %c1 = arith.constant 1 : index
    %c0_8 = arith.constant 0 : index
    %13 = vector.load %arg8[%c1, %c0_8] : memref<2x128xf32, #tpu.memory_space<vmem>>, vector<1x128xf32>
    %14 = vector.broadcast %13 : vector<1x128xf32> to vector<4x128xf32>
    %15 = arith.mulf %12, %14 : vector<4x128xf32>
    %16 = tpu.concatenate %11, %7, %15 in 0 : vector<4x128xf32>, vector<4x128xf32>, vector<4x128xf32> -> vector<12x128xf32>
    %c0_9 = arith.constant 0 : index
    %c0_10 = arith.constant 0 : index
    %17 = vector.load %arg4[%c0_9, %c0_10] : memref<4x12xf32, #tpu.memory_space<vmem>>, vector<4x12xf32>
    %cst_11 = arith.constant dense<0.000000e+00> : vector<4x128xf32>
    %18 = tpu.matmul %17, %16, %cst_11 {dimension_numbers = #tpu.dot_dimension_numbers<[1], [0], [0], [1], [0, 0, 1, 1], [], []>} : vector<4x12xf32>, vector<12x128xf32>, vector<4x128xf32> -> vector<4x128xf32>
    %c0_12 = arith.constant 0 : index
    %c0_13 = arith.constant 0 : index
    %19 = vector.load %arg5[%c0_12, %c0_13] : memref<4x1xf32, #tpu.memory_space<vmem>>, vector<4x1xf32>
    %20 = vector.broadcast %19 : vector<4x1xf32> to vector<4x128xf32>
    %21 = arith.addf %18, %20 : vector<4x128xf32>
    %cst_14 = arith.constant 0.000000e+00 : f32
    %22 = vector.broadcast %cst_14 : f32 to vector<4x128xf32>
    %23 = arith.maximumf %21, %22 : vector<4x128xf32>
    %c0_15 = arith.constant 0 : index
    %c0_16 = arith.constant 0 : index
    %24 = vector.load %arg6[%c0_15, %c0_16] : memref<16x4xf32, #tpu.memory_space<vmem>>, vector<16x4xf32>
    %cst_17 = arith.constant dense<0.000000e+00> : vector<16x128xf32>
    %25 = tpu.matmul %24, %23, %cst_17 {dimension_numbers = #tpu.dot_dimension_numbers<[1], [0], [0], [1], [0, 0, 1, 1], [], []>} : vector<16x4xf32>, vector<4x128xf32>, vector<16x128xf32> -> vector<16x128xf32>
    %c0_18 = arith.constant 0 : index
    %c0_19 = arith.constant 0 : index
    %26 = vector.load %arg7[%c0_18, %c0_19] : memref<16x1xf32, #tpu.memory_space<vmem>>, vector<16x1xf32>
    %27 = vector.broadcast %26 : vector<16x1xf32> to vector<16x128xf32>
    %28 = arith.addf %25, %27 : vector<16x128xf32>
    %29 = arith.addf %28, %0 : vector<16x128xf32>
    %cst_20 = arith.constant 0.000000e+00 : f32
    %30 = vector.broadcast %cst_20 : f32 to vector<16x128xf32>
    %31 = arith.maximumf %29, %30 : vector<16x128xf32>
    %c0_21 = arith.constant 0 : index
    %c0_22 = arith.constant 0 : index
    %32 = vector.load %arg9[%c0_21, %c0_22] : memref<16x128xf32, #tpu.memory_space<vmem>>, vector<16x128xf32>
    tpu.vector_store %arg9[%c0_21, %c0_22], %31 {strides = array<i32>} : memref<16x128xf32, #tpu.memory_space<vmem>>, vector<16x128xf32>,
    return
  }
  func.func @transform_0(%arg0: i32) -> (i32, i32) {
    %c0_i32 = arith.constant 0 : i32
    %c0_i32_0 = arith.constant 0 : i32
    return %c0_i32, %arg0 : i32, i32
  }
  func.func @transform_1(%arg0: i32) -> (i32, i32) {
    %c0_i32 = arith.constant 0 : i32
    %c0_i32_0 = arith.constant 0 : i32
    %c0_i32_1 = arith.constant 0 : i32
    return %c0_i32, %c0_i32_0 : i32, i32
  }
  func.func @transform_2(%arg0: i32) -> (i32, i32) {
    %c0_i32 = arith.constant 0 : i32
    %c0_i32_0 = arith.constant 0 : i32
    %c0_i32_1 = arith.constant 0 : i32
    return %c0_i32, %c0_i32_0 : i32, i32
  }
  func.func @transform_3(%arg0: i32) -> (i32, i32) {
    %c0_i32 = arith.constant 0 : i32
    %c0_i32_0 = arith.constant 0 : i32
    %c0_i32_1 = arith.constant 0 : i32
    return %c0_i32, %c0_i32_0 : i32, i32
  }
  func.func @transform_4(%arg0: i32) -> (i32, i32) {
    %c0_i32 = arith.constant 0 : i32
    %c0_i32_0 = arith.constant 0 : i32
    %c0_i32_1 = arith.constant 0 : i32
    return %c0_i32, %c0_i32_0 : i32, i32
  }
  func.func @transform_5(%arg0: i32) -> (i32, i32) {
    %c0_i32 = arith.constant 0 : i32
    %c0_i32_0 = arith.constant 0 : i32
    %c0_i32_1 = arith.constant 0 : i32
    return %c0_i32, %c0_i32_0 : i32, i32
  }
  func.func @transform_6(%arg0: i32) -> (i32, i32) {
    %c0_i32 = arith.constant 0 : i32
    %c0_i32_0 = arith.constant 0 : i32
    %c0_i32_1 = arith.constant 0 : i32
    return %c0_i32, %c0_i32_0 : i32, i32
  }
  func.func @transform_7(%arg0: i32) -> (i32, i32) {
    %c0_i32 = arith.constant 0 : i32
    %c0_i32_0 = arith.constant 0 : i32
    %c0_i32_1 = arith.constant 0 : i32
    return %c0_i32, %c0_i32_0 : i32, i32
  }
  func.func @transform_8(%arg0: i32) -> (i32, i32) {
    %c0_i32 = arith.constant 0 : i32
    %c0_i32_0 = arith.constant 0 : i32
    return %c0_i32, %arg0 : i32, i32
  }
}

</mosaic_0001>

<llo_original>
// kernel: tpu_custom_call.1
$region0: #{tpu_custom_call.1}
  #allocation0 [shape = 'u32[]', space=smem, size = 0x4, offset = 0x4, fixed_abs, tag = 'smem constant byte address 0x4 - core index']
  #allocation1 [shape = 'u32[72,128]{1,0:T(1,128)}', space=vmem, size = 0x9000, scoped, tag = 'internal scratch']
  %s0 = inlined_call_operand.vmem [shape: f32[16,256], index: 0, kind: input, shape index: {}]
  %s1 = inlined_call_operand.vmem [shape: f32[4,16], index: 1, kind: input, shape index: {}]
  %s2 = inlined_call_operand.vmem [shape: f32[4,1], index: 2, kind: input, shape index: {}]
  %s3 = inlined_call_operand.vmem [shape: f32[4,12], index: 3, kind: input, shape index: {}]
  %s4 = inlined_call_operand.vmem [shape: f32[4,1], index: 4, kind: input, shape index: {}]
  %s5 = inlined_call_operand.vmem [shape: f32[16,4], index: 5, kind: input, shape index: {}]
  %s6 = inlined_call_operand.vmem [shape: f32[16,1], index: 6, kind: input, shape index: {}]
  %s7 = inlined_call_operand.vmem [shape: f32[2,128], index: 7, kind: input, shape index: {}]
  %s8 = inlined_call_operand.hbm [shape: f32[16,256], index: 8, kind: output, shape index: {}]
  %s9 = sld [smem:[#allocation0]]
  $region103: #{tpu_custom_call.1} parent=0
    _
  %s11 = ssub.s32 1, %s9
  %s12 = scalar_select 0, %s11, %s9
  $region1: #{tpu_custom_call.1} parent=0
    #allocation2 [shape = 'u8[16384]{0}', space=vmem, size = 0x4000, scoped, tag = 'input window, operand 0']
    #allocation3 [shape = 'u8[16384]{0}', space=vmem, size = 0x4000, scoped, tag = 'output window, operand 0']
    #allocation4 [shape = 's32[2]{0}', space=sflag, size = 0x8, scoped, tag = 'scoped memory for tpu_custom_call.1']
    %13 = vsyncpa [#allocation4], 0
    %s14 = scalar_lea.sflag [#allocation4], 1
    %15 = vsyncpa %s14, 0
    loop: start=0, step=1, limit=4
    $region2: #{tpu_custom_call.1} parent=1 // loop_pre_header
      _
    $region3: #{tpu_custom_call.1} parent=1 // loop_header
      %s17 = sphi 0, %s21
      %p18 = scmp.ge.s32.totalorder %s17, 4
      %s27 = sphi 0, %s29
      %s30 = sphi 0, %s27
      %s31 = sphi 0, %s30
      %s47 = sphi 0, %s31
      %s51 = sphi 0, %s51
      %s53 = sphi 0, %s51
      %s54 = sphi 0, %s53
      %s68 = sphi 0, %s54
      %s72 = sphi 0, %s72
      %s74 = sphi 0, %s72
      %s75 = sphi 0, %s74
      %s89 = sphi 0, %s75
      %s93 = sphi 0, %s93
      %s95 = sphi 0, %s93
      %s96 = sphi 0, %s95
      %s110 = sphi 0, %s96
      %s114 = sphi 0, %s114
      %s116 = sphi 0, %s114
      %s117 = sphi 0, %s116
      %s131 = sphi 0, %s117
      %s135 = sphi 0, %s135
      %s137 = sphi 0, %s135
      %s138 = sphi 0, %s137
      %s152 = sphi 0, %s138
      %s156 = sphi 0, %s156
      %s158 = sphi 0, %s156
      %s159 = sphi 0, %s158
      %s173 = sphi 0, %s159
      %s177 = sphi 0, %s177
      %s179 = sphi 0, %s177
      %s180 = sphi 0, %s179
      %s194 = sphi 0, %s180
      %s200 = sphi 0, %s202
      %s203 = sphi 0, %s200
      %s204 = sphi 0, %s203
      %s220 = sphi 0, %s204
    $region4: #{tpu_custom_call.1} parent=1 // loop_header_branch
      %20 = sbr.rel (%p18) target = $region8
    $region5: #{tpu_custom_call.1} parent=1 // loop_body
      %s22 = ssub.s32 %s17, 1
      %s23 = ssub.s32 %s17, 2
      %s24 = sadd.s32 %s17, 1
      %s25 = ssub.s32 %s17, %s24
      %p26 = scmp.eq.s32.totalorder %s25, 0
      %s28 = sadd.s32 %s27, 1
      %s29 = scalar_select %p26, %s27, %s28
      %p32 = pneg %p26
      %p33 = scmp.eq.s32.totalorder %s17, 1
      %p34 = por %p32, %p33
      %p35 = scmp.ne.s32.totalorder %s27, %s30
      %p36 = scmp.eq.s32.totalorder %s17, 0
      %p37 = por %p35, %p36
      %p38 = scmp.ne.s32.totalorder %s27, %s30
      %p39 = scmp.eq.s32.totalorder %s22, 1
      %p40 = por %p38, %p39
      %p41 = scmp.ne.s32.totalorder %s30, %s31
      %p42 = scmp.eq.s32.totalorder %s22, 0
      %p43 = por %p41, %p42
      %p44 = scmp.ne.s32.totalorder %s30, %s31
      %p45 = scmp.eq.s32.totalorder %s23, 1
      %p46 = por %p44, %p45
      %p48 = scmp.ne.s32.totalorder %s31, %s47
      %p49 = scmp.eq.s32.totalorder %s23, 0
      %p50 = por %p48, %p49
      %s52 = sadd.s32 %s51, 1
      %p55 = scmp.eq.s32.totalorder %s17, 1
      %p56 = scmp.ne.s32.totalorder %s51, %s53
      %p57 = scmp.eq.s32.totalorder %s17, 0
      %p58 = por %p56, %p57
      %p59 = scmp.ne.s32.totalorder %s51, %s53
      %p60 = scmp.eq.s32.totalorder %s22, 1
      %p61 = por %p59, %p60
      %p62 = scmp.ne.s32.totalorder %s53, %s54
      %p63 = scmp.eq.s32.totalorder %s22, 0
      %p64 = por %p62, %p63
      %p65 = scmp.ne.s32.totalorder %s53, %s54
      %p66 = scmp.eq.s32.totalorder %s23, 1
      %p67 = por %p65, %p66
      %p69 = scmp.ne.s32.totalorder %s54, %s68
      %p70 = scmp.eq.s32.totalorder %s23, 0
      %p71 = por %p69, %p70
      %s73 = sadd.s32 %s72, 1
      %p76 = scmp.eq.s32.totalorder %s17, 1
      %p77 = scmp.ne.s32.totalorder %s72, %s74
      %p78 = scmp.eq.s32.totalorder %s17, 0
      %p79 = por %p77, %p78
      %p80 = scmp.ne.s32.totalorder %s72, %s74
      %p81 = scmp.eq.s32.totalorder %s22, 1
      %p82 = por %p80, %p81
      %p83 = scmp.ne.s32.totalorder %s74, %s75
      %p84 = scmp.eq.s32.totalorder %s22, 0
      %p85 = por %p83, %p84
      %p86 = scmp.ne.s32.totalorder %s74, %s75
      %p87 = scmp.eq.s32.totalorder %s23, 1
      %p88 = por %p86, %p87
      %p90 = scmp.ne.s32.totalorder %s75, %s89
      %p91 = scmp.eq.s32.totalorder %s23, 0
      %p92 = por %p90, %p91
      %s94 = sadd.s32 %s93, 1
      %p97 = scmp.eq.s32.totalorder %s17, 1
      %p98 = scmp.ne.s32.totalorder %s93, %s95
      %p99 = scmp.eq.s32.totalorder %s17, 0
      %p100 = por %p98, %p99
      %p101 = scmp.ne.s32.totalorder %s93, %s95
      %p102 = scmp.eq.s32.totalorder %s22, 1
      %p103 = por %p101, %p102
      %p104 = scmp.ne.s32.totalorder %s95, %s96
      %p105 = scmp.eq.s32.totalorder %s22, 0
      %p106 = por %p104, %p105
      %p107 = scmp.ne.s32.totalorder %s95, %s96
      %p108 = scmp.eq.s32.totalorder %s23, 1
      %p109 = por %p107, %p108
      %p111 = scmp.ne.s32.totalorder %s96, %s110
      %p112 = scmp.eq.s32.totalorder %s23, 0
      %p113 = por %p111, %p112
      %s115 = sadd.s32 %s114, 1
      %p118 = scmp.eq.s32.totalorder %s17, 1
      %p119 = scmp.ne.s32.totalorder %s114, %s116
      %p120 = scmp.eq.s32.totalorder %s17, 0
      %p121 = por %p119, %p120
      %p122 = scmp.ne.s32.totalorder %s114, %s116
      %p123 = scmp.eq.s32.totalorder %s22, 1
      %p124 = por %p122, %p123
      %p125 = scmp.ne.s32.totalorder %s116, %s117
      %p126 = scmp.eq.s32.totalorder %s22, 0
      %p127 = por %p125, %p126
      %p128 = scmp.ne.s32.totalorder %s116, %s117
      %p129 = scmp.eq.s32.totalorder %s23, 1
      %p130 = por %p128, %p129
      %p132 = scmp.ne.s32.totalorder %s117, %s131
      %p133 = scmp.eq.s32.totalorder %s23, 0
      %p134 = por %p132, %p133
      %s136 = sadd.s32 %s135, 1
      %p139 = scmp.eq.s32.totalorder %s17, 1
      %p140 = scmp.ne.s32.totalorder %s135, %s137
      %p141 = scmp.eq.s32.totalorder %s17, 0
      %p142 = por %p140, %p141
      %p143 = scmp.ne.s32.totalorder %s135, %s137
      %p144 = scmp.eq.s32.totalorder %s22, 1
      %p145 = por %p143, %p144
      %p146 = scmp.ne.s32.totalorder %s137, %s138
      %p147 = scmp.eq.s32.totalorder %s22, 0
      %p148 = por %p146, %p147
      %p149 = scmp.ne.s32.totalorder %s137, %s138
      %p150 = scmp.eq.s32.totalorder %s23, 1
      %p151 = por %p149, %p150
      %p153 = scmp.ne.s32.totalorder %s138, %s152
      %p154 = scmp.eq.s32.totalorder %s23, 0
      %p155 = por %p153, %p154
      %s157 = sadd.s32 %s156, 1
      %p160 = scmp.eq.s32.totalorder %s17, 1
      %p161 = scmp.ne.s32.totalorder %s156, %s158
      %p162 = scmp.eq.s32.totalorder %s17, 0
      %p163 = por %p161, %p162
      %p164 = scmp.ne.s32.totalorder %s156, %s158
      %p165 = scmp.eq.s32.totalorder %s22, 1
      %p166 = por %p164, %p165
      %p167 = scmp.ne.s32.totalorder %s158, %s159
      %p168 = scmp.eq.s32.totalorder %s22, 0
      %p169 = por %p167, %p168
      %p170 = scmp.ne.s32.totalorder %s158, %s159
      %p171 = scmp.eq.s32.totalorder %s23, 1
      %p172 = por %p170, %p171
      %p174 = scmp.ne.s32.totalorder %s159, %s173
      %p175 = scmp.eq.s32.totalorder %s23, 0
      %p176 = por %p174, %p175
      %s178 = sadd.s32 %s177, 1
      %p181 = scmp.eq.s32.totalorder %s17, 1
      %p182 = scmp.ne.s32.totalorder %s177, %s179
      %p183 = scmp.eq.s32.totalorder %s17, 0
      %p184 = por %p182, %p183
      %p185 = scmp.ne.s32.totalorder %s177, %s179
      %p186 = scmp.eq.s32.totalorder %s22, 1
      %p187 = por %p185, %p186
      %p188 = scmp.ne.s32.totalorder %s179, %s180
      %p189 = scmp.eq.s32.totalorder %s22, 0
      %p190 = por %p188, %p189
      %p191 = scmp.ne.s32.totalorder %s179, %s180
      %p192 = scmp.eq.s32.totalorder %s23, 1
      %p193 = por %p191, %p192
      %p195 = scmp.ne.s32.totalorder %s180, %s194
      %p196 = scmp.eq.s32.totalorder %s23, 0
      %p197 = por %p195, %p196
      %s198 = ssub.s32 %s17, %s24
      %p199 = scmp.eq.s32.totalorder %s198, 0
      %s201 = sadd.s32 %s200, 1
      %s202 = scalar_select %p199, %s200, %s201
      %p205 = pneg %p199
      %p206 = scmp.eq.s32.totalorder %s17, 1
      %p207 = por %p205, %p206
      %p208 = scmp.ne.s32.totalorder %s200, %s203
      %p209 = scmp.eq.s32.totalorder %s17, 0
      %p210 = por %p208, %p209
      %p211 = scmp.ne.s32.totalorder %s200, %s203
      %p212 = scmp.eq.s32.totalorder %s22, 1
      %p213 = por %p211, %p212
      %p214 = scmp.ne.s32.totalorder %s203, %s204
      %p215 = scmp.eq.s32.totalorder %s22, 0
      %p216 = por %p214, %p215
      %p217 = scmp.ne.s32.totalorder %s203, %s204
      %p218 = scmp.eq.s32.totalorder %s23, 1
      %p219 = por %p217, %p218
      %p221 = scmp.ne.s32.totalorder %s204, %s220
      %p222 = scmp.eq.s32.totalorder %s23, 0
      %p223 = por %p221, %p222
      %p224 = scmp.le.s32.totalorder 1, %s17
      %p225 = scmp.lt.s32.totalorder %s17, 3
      %p226 = pnand %p224, %p225
      %p227 = pneg %p226
      // Predicated region
      $region9: #{tpu_custom_call.1} parent=5 // pred_check
        _
      $region10: #{tpu_custom_call.1} parent=5 // pred_check_branch
        %229 = sbr.rel (%p226) target = $region12
      $region11: #{tpu_custom_call.1} parent=5 // pred_region
        %s230 = ssub.s32 %s17, 1
        // Predicated region
        $region13: #{tpu_custom_call.1} parent=11 // pred_check
          %p231 = pneg %p64
        $region14: #{tpu_custom_call.1} parent=11 // pred_check_branch
          %233 = sbr.rel (%p231) target = $region16
        $region15: #{tpu_custom_call.1} parent=11 // pred_region
          _
        $region16: #{tpu_custom_call.1} parent=11 // pred_fallthru
          _
        // Predicated region
        $region17: #{tpu_custom_call.1} parent=11 // pred_check
          %p234 = pneg %p85
        $region18: #{tpu_custom_call.1} parent=11 // pred_check_branch
          %236 = sbr.rel (%p234) target = $region20
        $region19: #{tpu_custom_call.1} parent=11 // pred_region
          _
        $region20: #{tpu_custom_call.1} parent=11 // pred_fallthru
          _
        // Predicated region
        $region21: #{tpu_custom_call.1} parent=11 // pred_check
          %p237 = pneg %p106
        $region22: #{tpu_custom_call.1} parent=11 // pred_check_branch
          %239 = sbr.rel (%p237) target = $region24
        $region23: #{tpu_custom_call.1} parent=11 // pred_region
          _
        $region24: #{tpu_custom_call.1} parent=11 // pred_fallthru
          _
        // Predicated region
        $region25: #{tpu_custom_call.1} parent=11 // pred_check
          %p240 = pneg %p127
        $region26: #{tpu_custom_call.1} parent=11 // pred_check_branch
          %242 = sbr.rel (%p240) target = $region28
        $region27: #{tpu_custom_call.1} parent=11 // pred_region
          _
        $region28: #{tpu_custom_call.1} parent=11 // pred_fallthru
          _
        // Predicated region
        $region29: #{tpu_custom_call.1} parent=11 // pred_check
          %p243 = pneg %p148
        $region30: #{tpu_custom_call.1} parent=11 // pred_check_branch
          %245 = sbr.rel (%p243) target = $region32
        $region31: #{tpu_custom_call.1} parent=11 // pred_region
          _
        $region32: #{tpu_custom_call.1} parent=11 // pred_fallthru
          _
        // Predicated region
        $region33: #{tpu_custom_call.1} parent=11 // pred_check
          %p246 = pneg %p169
        $region34: #{tpu_custom_call.1} parent=11 // pred_check_branch
          %248 = sbr.rel (%p246) target = $region36
        $region35: #{tpu_custom_call.1} parent=11 // pred_region
          _
        $region36: #{tpu_custom_call.1} parent=11 // pred_fallthru
          _
        // Predicated region
        $region37: #{tpu_custom_call.1} parent=11 // pred_check
          %p249 = pneg %p190
        $region38: #{tpu_custom_call.1} parent=11 // pred_check_branch
          %251 = sbr.rel (%p249) target = $region40
        $region39: #{tpu_custom_call.1} parent=11 // pred_region
          _
        $region40: #{tpu_custom_call.1} parent=11 // pred_fallthru
          _
      $region12: #{tpu_custom_call.1} parent=5 // pred_fallthru
        _
      %p252 = scmp.lt.s32.totalorder %s17, 2
      // Predicated region
      $region41: #{tpu_custom_call.1} parent=5 // pred_check
        %p253 = pneg %p252
      $region42: #{tpu_custom_call.1} parent=5 // pred_check_branch
        %255 = sbr.rel (%p253) target = $region44
      $region43: #{tpu_custom_call.1} parent=5 // pred_region
        // Predicated region
        $region45: #{tpu_custom_call.1} parent=43 // pred_check
          %p256 = pneg %p37
        $region46: #{tpu_custom_call.1} parent=43 // pred_check_branch
          %258 = sbr.rel (%p256) target = $region48
        $region47: #{tpu_custom_call.1} parent=43 // pred_region
          %s259 = sand.u32 %s27, 1
          %s260 = sand.u32 %s27, 1
          %s261 = smul.addr %s260, 16
          %s262 = scalar_lea.vmem [#allocation2], %s261
          %s263 = smul.addr %s17, 8
          %s264 = scalar_lea.vmem %s0, %s263
          // Predicated region
          $region49: #{tpu_custom_call.1} parent=47 // pred_check
            _
          $region50: #{tpu_custom_call.1} parent=47 // pred_check_branch
            %266 = sbr.rel (0) target = $region52
          $region51: #{tpu_custom_call.1} parent=47 // pred_region
            // Predicated region
            $region53: #{tpu_custom_call.1} parent=51 // pred_check
              _
            $region54: #{tpu_custom_call.1} parent=51 // pred_check_branch
              %268 = sbr.rel (0) target = $region56
            $region55: #{tpu_custom_call.1} parent=51 // pred_region
              // Predicated region
              $region68: #{tpu_custom_call.1} parent=55 // pred_check
                _
              $region69: #{tpu_custom_call.1} parent=55 // pred_check_branch
                %286 = sbr.rel (0) target = $region71
              $region70: #{tpu_custom_call.1} parent=55 // pred_region
                loop: start=0, step=1, limit=1
                $region72: #{tpu_custom_call.1} parent=70 // loop_pre_header
                  _
                $region73: #{tpu_custom_call.1} parent=70 // loop_header
                  %s288 = sphi 0, %s292
                  %p289 = scmp.ge.s32.totalorder %s288, 1
                  %s293 = sphi %s264, %s264
                  %s294 = sphi %s262, %s262
                $region74: #{tpu_custom_call.1} parent=70 // loop_header_branch
                  %291 = sbr.rel (%p289) target = $region78
                $region75: #{tpu_custom_call.1} parent=70 // loop_body
                  %v295 = vld [vmem:[%s293] sm:$0xff]
                  %296 = vst [vmem:[%s294] sm:$0xff] %v295
                  %v297 = vld [vmem:[%s293 + $0x10] sm:$0xff]
                  %298 = vst [vmem:[%s294 + $0x8] sm:$0xff] %v297
                $region76: #{tpu_custom_call.1} parent=70 // loop_footer
                  %s292 = sadd.s32 1, %s288
                $region77: #{tpu_custom_call.1} parent=70 // loop_footer_branch
                  %287 = sbr.rel target = $region73
                $region78: #{tpu_custom_call.1} parent=70 // loop_exit
                  _
              $region71: #{tpu_custom_call.1} parent=55 // pred_fallthru
                _
              // Predicated region
              $region79: #{tpu_custom_call.1} parent=55 // pred_check
                _
              $region80: #{tpu_custom_call.1} parent=55 // pred_check_branch
                %300 = sbr.rel target = $region82
              $region81: #{tpu_custom_call.1} parent=55 // pred_region
                _
              $region82: #{tpu_custom_call.1} parent=55 // pred_fallthru
                _
            $region56: #{tpu_custom_call.1} parent=51 // pred_fallthru
              _
            // Predicated region
            $region57: #{tpu_custom_call.1} parent=51 // pred_check
              _
            $region58: #{tpu_custom_call.1} parent=51 // pred_check_branch
              %270 = sbr.rel target = $region60
            $region59: #{tpu_custom_call.1} parent=51 // pred_region
              %s272 = ssub.s32 256, 1
              loop: start=0, step=1, limit=1
              $region61: #{tpu_custom_call.1} parent=59 // loop_pre_header
                _
              $region62: #{tpu_custom_call.1} parent=59 // loop_header
                %s274 = sphi 0, %s278
                %p275 = scmp.ge.s32.totalorder %s274, 1
                %s279 = sphi %s264, %s264
                %s280 = sphi %s262, %s262
              $region63: #{tpu_custom_call.1} parent=59 // loop_header_branch
                %277 = sbr.rel (%p275) target = $region67
              $region64: #{tpu_custom_call.1} parent=59 // loop_body
                %v281 = vld [vmem:[%s279] sm:%s272]
                %282 = vst [vmem:[%s280] sm:%s272] %v281
                %v283 = vld [vmem:[%s279 + $0x10] sm:%s272]
                %284 = vst [vmem:[%s280 + $0x8] sm:%s272] %v283
              $region65: #{tpu_custom_call.1} parent=59 // loop_footer
                %s278 = sadd.s32 1, %s274
              $region66: #{tpu_custom_call.1} parent=59 // loop_footer_branch
                %273 = sbr.rel target = $region62
              $region67: #{tpu_custom_call.1} parent=59 // loop_exit
                _
            $region60: #{tpu_custom_call.1} parent=51 // pred_fallthru
              _
          $region52: #{tpu_custom_call.1} parent=47 // pred_fallthru
            _
          %301 = vnop
        $region48: #{tpu_custom_call.1} parent=43 // pred_fallthru
          _
      $region44: #{tpu_custom_call.1} parent=5 // pred_fallthru
        _
      %p302 = scmp.le.s32.totalorder 1, %s17
      %p303 = scmp.lt.s32.totalorder %s17, 3
      %p304 = pnand %p302, %p303
      %p305 = pneg %p304
      // Predicated region
      $region83: #{tpu_custom_call.1} parent=5 // pred_check
        _
      $region84: #{tpu_custom_call.1} parent=5 // pred_check_branch
        %307 = sbr.rel (%p304) target = $region86
      $region85: #{tpu_custom_call.1} parent=5 // pred_region
        %s308 = ssub.s32 %s17, 1
        %s309 = sand.u32 %s30, 1
        %s310 = sand.u32 %s30, 1
        %s311 = smul.addr %s310, 16
        %s312 = scalar_lea.vmem [#allocation2], %s311
        // Predicated region
        $region87: #{tpu_custom_call.1} parent=85 // pred_check
          %p313 = pneg %p43
        $region88: #{tpu_custom_call.1} parent=85 // pred_check_branch
          %315 = sbr.rel (%p313) target = $region90
        $region89: #{tpu_custom_call.1} parent=85 // pred_region
          _
        $region90: #{tpu_custom_call.1} parent=85 // pred_fallthru
          _
        %s316 = sand.u32 %s30, 1
        %s317 = sand.u32 %s30, 1
        %s318 = smul.addr %s317, 16
        %s319 = scalar_lea.vmem [#allocation2], %s318
        %p320 = pneg %p43
        %p321 = pneg %p40
        %p322 = pneg %p64
        %p323 = pneg %p61
        %p324 = pneg %p85
        %p325 = pneg %p82
        %p326 = pneg %p106
        %p327 = pneg %p103
        %p328 = pneg %p127
        %p329 = pneg %p124
        %p330 = pneg %p148
        %p331 = pneg %p145
        %p332 = pneg %p169
        %p333 = pneg %p166
        %p334 = pneg %p190
        %p335 = pneg %p187
        %p336 = pneg %p216
        %p337 = pneg %p213
        %s338 = sand.u32 %s203, 1
        %s339 = scalar_lea.sflag [#allocation4], %s338
        %s340 = sand.u32 %s203, 1
        %s341 = smul.addr %s340, 16
        %s342 = scalar_lea.vmem [#allocation3], %s341
        %v343 = vld [vmem:[%s312] sm:$0xff]
        %v344 = vld [vmem:[%s312 + $0x8] sm:$0xff]
        %v345 = vld [vmem:[%s1] sm:$0xf]
        %v346 = vld [vmem:[%s2] sm:$0xf]
        %348 = vset.pattern.permute.xlu0 0
        %349 = vperm.xlu0 %348, %v346
        %v350 = vpop.permute.xlu0 %349
        %vm352 = vcmask 130048
        %v354 = vsel %vm352, %v345, 0
        %356 = vmatpush.msra.mxu0 0.0
        %357 = vmatpush.msra.mxu0 0.0
        %358 = vmatpush.msra.mxu0 0.0
        %359 = vmatpush.msra.mxu0 0.0
        %360 = vmatpush.msra.mxu0 0.0
        %361 = vmatpush.msra.mxu0 0.0
        %362 = vmatpush.msra.mxu0 0.0
        %363 = vmatpush.msra.mxu0 0.0
        %364 = vmatpush.msra.mxu0 0.0
        %365 = vmatpush.msra.mxu0 0.0
        %366 = vmatpush.msra.mxu0 0.0
        %367 = vmatpush.msra.mxu0 0.0
        %368 = vmatpush.msra.mxu0 0.0
        %369 = vmatpush.msra.mxu0 0.0
        %370 = vmatpush.msra.mxu0 %v344
        %371 = vmatpush.msra.mxu0 %v343
        %372 = vmatmul.f32.gmra.mxu0 %v354
        %v373 = vpop.f32.mrf.mxu0
        %v374 = vadd.f32 %v350, %v373
        %375 = vdwg.mxu0
        %v376 = vmax.f32 %v374, 0.0
        %377 = vrot.lane.b32.xlu0 %v376, 1
        %v378 = vpop.permute.xlu0 %377
        %v379 = vld [vmem:[%s7] sm:$0x1]
        %v380 = vperm.slane %v379, 0
        %v381 = vmul.f32 %v378, %v380
        %382 = vrot.lane.b32.xlu0 %v376, 127
        %v383 = vpop.permute.xlu0 %382
        %v384 = vld [vmem:[%s7 + $0x1] sm:$0x1]
        %v385 = vperm.slane %v384, 0
        %v386 = vmul.f32 %v383, %v385
        %v388 = vrot.slane %v376, 4
        %vm390 = vcmask 1043456
        %v391 = vsel %vm390, %v381, %v388
        %v392 = vld [vmem:[%s3] sm:$0xf]
        %v393 = vld [vmem:[%s4] sm:$0xf]
        %395 = vset.pattern.permute.xlu0 0
        %396 = vperm.xlu0 %395, %v393
        %v397 = vpop.permute.xlu0 %396
        %vm399 = vcmask 97280
        %v401 = vsel %vm399, %v392, 0
        %v404 = vsel %vm390, %v386, 0
        %406 = vmatpush.msra.mxu0 0.0
        %407 = vmatpush.msra.mxu0 0.0
        %408 = vmatpush.msra.mxu0 0.0
        %409 = vmatpush.msra.mxu0 0.0
        %410 = vmatpush.msra.mxu0 0.0
        %411 = vmatpush.msra.mxu0 0.0
        %412 = vmatpush.msra.mxu0 0.0
        %413 = vmatpush.msra.mxu0 0.0
        %414 = vmatpush.msra.mxu0 0.0
        %415 = vmatpush.msra.mxu0 0.0
        %416 = vmatpush.msra.mxu0 0.0
        %417 = vmatpush.msra.mxu0 0.0
        %418 = vmatpush.msra.mxu0 0.0
        %419 = vmatpush.msra.mxu0 0.0
        %420 = vmatpush.msra.mxu0 %v404
        %421 = vmatpush.msra.mxu0 %v391
        %422 = vmatmul.f32.gmra.mxu0 %v401
        %v423 = vpop.f32.mrf.mxu0
        %v424 = vadd.f32 %v397, %v423
        %425 = vdwg.mxu0
        %v426 = vmax.f32 %v424, 0.0
        %v427 = vld [vmem:[%s5] sm:$0xff]
        %v428 = vld [vmem:[%s5 + $0x8] sm:$0xff]
        %v429 = vld [vmem:[%s6] sm:$0xff]
        %v430 = vld [vmem:[%s6 + $0x8] sm:$0xff]
        %432 = vset.pattern.permute.xlu0 0
        %433 = vperm.xlu0 %432, %v429
        %v434 = vpop.permute.xlu0 %433
        %437 = vset.pattern.permute.xlu0 0
        %438 = vperm.xlu0 %437, %v430
        %v439 = vpop.permute.xlu0 %438
        %vm441 = vcmask 31744
        %v443 = vsel %vm441, %v427, 0
        %v446 = vsel %vm441, %v428, 0
        %v449 = vsel %vm390, %v426, 0
        %451 = vmatpush.msra.mxu0 0.0
        %452 = vmatpush.msra.mxu0 0.0
        %453 = vmatpush.msra.mxu0 0.0
        %454 = vmatpush.msra.mxu0 0.0
        %455 = vmatpush.msra.mxu0 0.0
        %456 = vmatpush.msra.mxu0 0.0
        %457 = vmatpush.msra.mxu0 0.0
        %458 = vmatpush.msra.mxu0 0.0
        %459 = vmatpush.msra.mxu0 0.0
        %460 = vmatpush.msra.mxu0 0.0
        %461 = vmatpush.msra.mxu0 0.0
        %462 = vmatpush.msra.mxu0 0.0
        %463 = vmatpush.msra.mxu0 0.0
        %464 = vmatpush.msra.mxu0 0.0
        %465 = vmatpush.msra.mxu0 0.0
        %466 = vmatpush.msra.mxu0 %v449
        %467 = vmatmul.f32.gmra.mxu0 %v443
        %v468 = vpop.f32.mrf.mxu0
        %v469 = vadd.f32 %v434, %v468
        %470 = vmatmul.f32.gmra.mxu0 %v446
        %v471 = vpop.f32.mrf.mxu0
        %v472 = vadd.f32 %v439, %v471
        %473 = vdwg.mxu0
        %v474 = vadd.f32 %v469, %v343
        %v475 = vadd.f32 %v472, %v344
        %v476 = vmax.f32 %v474, 0.0
        %v477 = vmax.f32 %v475, 0.0
        %478 = vst [vmem:[%s342] sm:$0xff] %v476
        %479 = vst [vmem:[%s342 + $0x8] sm:$0xff] %v477
        %s480 = sand.u32 %s203, 1
        %s481 = scalar_lea.sflag [#allocation4], %s480
        %s482 = sand.u32 %s203, 1
        %s483 = smul.addr %s482, 16
        %s484 = scalar_lea.vmem [#allocation3], %s483
        // Predicated region
        $region91: #{tpu_custom_call.1} parent=85 // pred_check
          %p485 = pneg %p213
        $region92: #{tpu_custom_call.1} parent=85 // pred_check_branch
          %487 = sbr.rel (%p485) target = $region94
        $region93: #{tpu_custom_call.1} parent=85 // pred_region
          %489 = vsyncadd %s481, 0
          %s490 = smul.addr %s22, 8
          %s491 = scalar_lea.hbm %s8, %s490
          %s492 = sshll.u32 %s484, 4
          %s493 = int_to_ptr.vmem [resolvable:$true] %s492
          %s494 = sshll.u32 %s491, 4
          %s495 = int_to_ptr.hbm [resolvable:$true] %s494
          %500 = dma.vmem_to_hbm [thread:$0]  %s493, 256, %s495, %s481, 128, 256, 8
        $region94: #{tpu_custom_call.1} parent=85 // pred_fallthru
          _
      $region86: #{tpu_custom_call.1} parent=5 // pred_fallthru
        _
      %p501 = scmp.le.s32.totalorder 2, %s17
      // Predicated region
      $region95: #{tpu_custom_call.1} parent=5 // pred_check
        %p502 = pneg %p501
      $region96: #{tpu_custom_call.1} parent=5 // pred_check_branch
        %504 = sbr.rel (%p502) target = $region98
      $region97: #{tpu_custom_call.1} parent=5 // pred_region
        %s505 = ssub.s32 %s17, 2
        // Predicated region
        $region99: #{tpu_custom_call.1} parent=97 // pred_check
          %p506 = pneg %p219
        $region100: #{tpu_custom_call.1} parent=97 // pred_check_branch
          %508 = sbr.rel (%p506) target = $region102
        $region101: #{tpu_custom_call.1} parent=97 // pred_region
          %s509 = sand.u32 %s204, 1
          %s510 = scalar_lea.sflag [#allocation4], %s509
          %s511 = sand.u32 %s204, 1
          %s512 = smul.addr %s511, 16
          %s513 = scalar_lea.vmem [#allocation3], %s512
          %515 = dma.done %s510, 256
        $region102: #{tpu_custom_call.1} parent=97 // pred_fallthru
          _
      $region98: #{tpu_custom_call.1} parent=5 // pred_fallthru
        _
    $region6: #{tpu_custom_call.1} parent=1 // loop_footer
      %s21 = sadd.s32 1, %s17
    $region7: #{tpu_custom_call.1} parent=1 // loop_footer_branch
      %16 = sbr.rel target = $region3
    $region8: #{tpu_custom_call.1} parent=1 // loop_exit
      _
    %516 = vsyncpa [#allocation4], 1
    %s517 = scalar_lea.sflag [#allocation4], 1
    %518 = vsyncpa %s517, 1

</llo_original>
